<compile_context>
chip_gen: v6e
topology: v6e:2x2x1
jax: 0.10.0
libtpu: 0.0.40
codegen_flags: <defaults>
</compile_context>

<pallas_src>
import functools

import jax
import jax.numpy as jnp
from jax import lax
from jax.experimental import pallas as pl
from jax.experimental.pallas import tpu as pltpu


def _losscon_sums_kernel(mask_w_ref, mask_h_ref, fuse_ref, vis_ref, ir_ref,
                         out_ref, acc_ir, acc_l1, acc_tv, *,
                         w, hw, cb, nc, steps_per_split, needs_masking):
    """Accumulates three raw sums over (cb, H*W) row-blocks.

    Per split (leading grid axis), writes a (1, 8, 128) tile where
        sublane 0 = sum (fuse - ir)^2
        sublane 1 = sum |fuse - vis|
        sublane 2 = sum of both TV squared diffs, r = fuse - vis
    """
    split = pl.program_id(0)
    step = pl.program_id(1)

    @pl.when(step == 0)
    def _():
        acc_ir[...] = jnp.zeros_like(acc_ir)
        acc_l1[...] = jnp.zeros_like(acc_l1)
        acc_tv[...] = jnp.zeros_like(acc_tv)

    f = fuse_ref[...].astype(jnp.float32)
    v = vis_ref[...].astype(jnp.float32)
    d_ir = f - ir_ref[...].astype(jnp.float32)
    r = f - v

    e_ir = d_ir * d_ir
    e_l1 = jnp.abs(r)

    # TV diffs on the flattened (cb, H*W) rows.  The "next" element along the
    # flattened axis comes from an XLU rotate; wrap-around terms are killed by
    # the precomputed (grid-invariant) 0/1 edge masks.
    mask_w = mask_w_ref[...]                      # (1, hw): 1 where w+1 exists
    mask_h = mask_h_ref[...]                      # (1, hw): 1 where h+1 exists
    nxt_w = pltpu.roll(r, hw - 1, axis=1)         # r[..., (k + 1) mod hw]
    nxt_h = pltpu.roll(r, hw - w, axis=1)         # r[..., (k + w) mod hw]
    dw = (nxt_w - r) * mask_w
    dh = (nxt_h - r) * mask_h
    e_tv = dh * dh + dw * dw

    def accumulate(a_ir, a_l1, a_tv):
        acc_ir[...] += a_ir
        acc_l1[...] += a_l1
        acc_tv[...] += a_tv

    if needs_masking:
        # Unclamped global block index -> number of valid rows in this block
        # (<= 0 for phantom blocks, whose DMA was clamped to the last valid
        # block by the index_map).
        rows_valid = nc - (split * steps_per_split + step) * cb

        @pl.when(rows_valid >= cb)               # common case: full block
        def _():
            accumulate(e_ir, e_l1, e_tv)

        @pl.when(rows_valid < cb)                # ragged last / phantom block
        def _():
            row = lax.broadcasted_iota(jnp.int32, (cb, hw), 0)
            keep = row < rows_valid
            zero = jnp.zeros_like(e_ir)
            accumulate(jnp.where(keep, e_ir, zero),
                       jnp.where(keep, e_l1, zero),
                       jnp.where(keep, e_tv, zero))
    else:
        accumulate(e_ir, e_l1, e_tv)

    # Single cross-lane reduction + output write, only on this split's last step.
    @pl.when(step == pl.num_programs(1) - 1)
    def _():
        s_ir = jnp.sum(acc_ir[...])
        s_l1 = jnp.sum(acc_l1[...])
        s_tv = jnp.sum(acc_tv[...])
        sub = lax.broadcasted_iota(jnp.int32, (1, 8, 128), 1)
        out_ref[...] = jnp.where(sub == 0, s_ir,
                       jnp.where(sub == 1, s_l1,
                       jnp.where(sub == 2, s_tv, 0.0)))


def _pick_block_rows(nc, hw, target_bytes=2 << 20):
    """Rows per block, sized in f32 bytes (so accumulators / temporaries stay
    bounded regardless of the input dtype): the whole tensor if small,
    otherwise a multiple of 8 giving roughly `target_bytes` per block."""
    if nc * hw * 4 <= target_bytes:
        return nc
    rows = (target_bytes // (hw * 4)) // 8 * 8
    return max(8, int(rows))


def loss_con(fuse, vis, ir, eta_vis=10.0, eta_ir=0.12, eta_tv=1.2, *,
             block_rows=None):
    """Pallas implementation of LossCon.forward. Inputs are NCHW, H == W."""
    N, C, H, W = fuse.shape
    if H != W:
        # The PyTorch reference (its [W, H] name swap) only type-checks for
        # square spatial inputs, and the merged TV normalizer relies on it.
        raise ValueError("LossCon requires square spatial dims (H == W).")
    NC, HW = N * C, H * W

    # Lane-dense flatten: last dim = H*W.
    f2 = fuse.reshape(NC, HW)
    v2 = vis.reshape(NC, HW)
    i2 = ir.reshape(NC, HW)

    cb = _pick_block_rows(NC, HW) if block_rows is None else min(int(block_rows), NC)
    if cb != NC and cb % 8 != 0:
        raise ValueError("block_rows must be a multiple of 8 or cover all rows")

    nblocks = (NC + cb - 1) // cb
    # Leading "parallel" axis: 2-way split of the row-blocks across the two
    # v7x TensorCores; on v5e/v6e it is just a serial split.
    num_splits = 2 if nblocks >= 2 else 1
    steps_per_split = (nblocks + num_splits - 1) // num_splits
    total_blocks = num_splits * steps_per_split
    needs_masking = (NC % cb != 0) or (total_blocks != nblocks)

    # Grid-invariant TV edge masks, built once outside the kernel.
    col = jnp.arange(HW, dtype=jnp.int32)
    mask_w = (col % W != W - 1).astype(jnp.float32).reshape(1, HW)
    mask_h = (col < HW - W).astype(jnp.float32).reshape(1, HW)

    def data_map(c, s):
        b = c * steps_per_split + s
        if total_blocks != nblocks:          # phantom blocks exist: clamp the
            b = jnp.minimum(b, nblocks - 1)  # DMA to a valid block (masked out)
        return (b, 0)

    tile_spec = pl.BlockSpec((cb, HW), data_map)
    mask_spec = pl.BlockSpec((1, HW), lambda c, s: (0, 0))

    kernel = functools.partial(
        _losscon_sums_kernel, w=W, hw=HW, cb=cb, nc=NC,
        steps_per_split=steps_per_split, needs_masking=needs_masking)

    partial_sums = pl.pallas_call(
        kernel,
        out_shape=jax.ShapeDtypeStruct((num_splits, 8, 128), jnp.float32),
        grid_spec=pltpu.PrefetchScalarGridSpec(
            num_scalar_prefetch=0,
            grid=(num_splits, steps_per_split),
            in_specs=[mask_spec, mask_spec, tile_spec, tile_spec, tile_spec],
            out_specs=pl.BlockSpec((1, 8, 128), lambda c, s: (c, 0, 0)),
            scratch_shapes=[
                pltpu.VMEM((cb, HW), jnp.float32),   # sum (fuse - ir)^2
                pltpu.VMEM((cb, HW), jnp.float32),   # sum |fuse - vis|
                pltpu.VMEM((cb, HW), jnp.float32),   # sum TV diffs^2 (h and w)
            ],
        ),
        compiler_params=pltpu.CompilerParams(
            dimension_semantics=("parallel", "arbitrary"),
            vmem_limit_bytes=48 * 1024 * 1024,
        ),
    )(mask_w, mask_h, f2, v2, i2)

    s_ir = jnp.sum(partial_sums[:, 0, 0])
    s_l1 = jnp.sum(partial_sums[:, 1, 0])
    s_tv = jnp.sum(partial_sums[:, 2, 0])

    n_all = jnp.float32(N * C * H * W)
    loss_ir = s_ir / n_all                              # MSELoss mean
    loss_vis = s_l1 / n_all                             # L1Loss mean
    # For H == W the two TV normalizers N*C*(H-1)*W and N*C*H*(W-1) coincide.
    loss_tv = s_tv / jnp.float32(N * C * (H - 1) * W)
    return eta_vis * loss_vis + eta_ir * loss_ir + eta_tv * loss_tv


def _loss_con_ref(fuse, vis, ir, eta_vis=10.0, eta_ir=0.12, eta_tv=1.2):
    """Pure-JAX reference mirroring the PyTorch forward (square spatial)."""
    loss_ir = jnp.mean((fuse - ir) ** 2)
    loss_vis = jnp.mean(jnp.abs(fuse - vis))
    r = fuse - vis
    tv1 = jnp.mean((r[:, :, 1:, :] - r[:, :, :-1, :]) ** 2)
    tv2 = jnp.mean((r[:, :, :, 1:] - r[:, :, :, :-1]) ** 2)
    return eta_vis * loss_vis + eta_ir * loss_ir + eta_tv * (tv1 + tv2)


if __name__ == "__main__":
    key = jax.random.PRNGKey(0)
    k1, k2, k3, k4, k5, k6 = jax.random.split(key, 6)

    # Primary check at the module-implied small shape (single block, 1 split).
    N, C, H, W = 2, 4, 16, 16
    fuse = jax.random.uniform(k1, (N, C, H, W), dtype=jnp.float32)
    vis = jax.random.uniform(k2, (N, C, H, W), dtype=jnp.float32)
    ir = jax.random.uniform(k3, (N, C, H, W), dtype=jnp.float32)
    out = jax.block_until_ready(loss_con(fuse, vis, ir))
    ref = _loss_con_ref(fuse, vis, ir)
    assert jnp.allclose(out, ref, rtol=1e-5, atol=1e-5), (out, ref)

    # Second check forcing the 2-way split + ragged-last-block + phantom-block
    # paths: NC = 18 rows with 8-row blocks -> 3 valid blocks across 2 splits.
    N2, C2 = 2, 9
    fuse2 = jax.random.uniform(k4, (N2, C2, H, W), dtype=jnp.float32)
    vis2 = jax.random.uniform(k5, (N2, C2, H, W), dtype=jnp.float32)
    ir2 = jax.random.uniform(k6, (N2, C2, H, W), dtype=jnp.float32)
    out2 = jax.block_until_ready(loss_con(fuse2, vis2, ir2, block_rows=8))
    ref2 = _loss_con_ref(fuse2, vis2, ir2)
    assert jnp.allclose(out2, ref2, rtol=1e-5, atol=1e-5), (out2, ref2)

    print("KERNEL_OK")
</pallas_src>

<mosaic_0001>
module attributes {stable_mosaic.version = 11 : i64} {
  func.func @_losscon_sums_kernel(%arg0: i32, %arg1: i32, %arg2: memref<1x256xf32, #tpu.memory_space<vmem>>, %arg3: memref<1x256xf32, #tpu.memory_space<vmem>>, %arg4: memref<8x256xf32, #tpu.memory_space<vmem>>, %arg5: memref<8x256xf32, #tpu.memory_space<vmem>>, %arg6: memref<8x256xf32, #tpu.memory_space<vmem>>, %arg7: memref<1x8x128xf32, #tpu.memory_space<vmem>>, %arg8: memref<8x256xf32, #tpu.memory_space<vmem>>, %arg9: memref<8x256xf32, #tpu.memory_space<vmem>>, %arg10: memref<8x256xf32, #tpu.memory_space<vmem>>) attributes {dimension_semantics = [#tpu.dimension_semantics<parallel>, #tpu.dimension_semantics<arbitrary>], iteration_bounds = array<i64: 1, 1>, scalar_prefetch = 0 : i64, scratch_operands = 3 : i64, tpu.core_type = #tpu.core_type<tc>, window_params = [{pipeline_mode = #tpu.pipeline_mode<synchronous>, transform_indices = @transform_0, window_bounds = array<i64: 1, 256>}, {pipeline_mode = #tpu.pipeline_mode<synchronous>, transform_indices = @transform_1, window_bounds = array<i64: 1, 256>}, {transform_indices = @transform_2, window_bounds = array<i64: 8, 256>}, {transform_indices = @transform_3, window_bounds = array<i64: 8, 256>}, {transform_indices = @transform_4, window_bounds = array<i64: 8, 256>}, {transform_indices = @transform_5, window_bounds = array<i64: 1, 8, 128>}]} {
    %c0_i32 = arith.constant 0 : i32
    %0 = arith.cmpi eq, %arg1, %c0_i32 : i32
    %1 = arith.extui %0 : i1 to i32
    %c0_i32_0 = arith.constant 0 : i32
    %2 = arith.cmpi ne, %1, %c0_i32_0 : i32
    scf.if %2 {
      %cst = arith.constant 0.000000e+00 : f32
      %35 = vector.broadcast %cst : f32 to vector<8x256xf32>
      %c0_24 = arith.constant 0 : index
      %c0_25 = arith.constant 0 : index
      %36 = vector.load %arg8[%c0_24, %c0_25] : memref<8x256xf32, #tpu.memory_space<vmem>>, vector<8x256xf32>
      tpu.vector_store %arg8[%c0_24, %c0_25], %35 {strides = array<i32>} : memref<8x256xf32, #tpu.memory_space<vmem>>, vector<8x256xf32>,
      %cst_26 = arith.constant 0.000000e+00 : f32
      %37 = vector.broadcast %cst_26 : f32 to vector<8x256xf32>
      %c0_27 = arith.constant 0 : index
      %c0_28 = arith.constant 0 : index
      %38 = vector.load %arg9[%c0_27, %c0_28] : memref<8x256xf32, #tpu.memory_space<vmem>>, vector<8x256xf32>
      tpu.vector_store %arg9[%c0_27, %c0_28], %37 {strides = array<i32>} : memref<8x256xf32, #tpu.memory_space<vmem>>, vector<8x256xf32>,
      %cst_29 = arith.constant 0.000000e+00 : f32
      %39 = vector.broadcast %cst_29 : f32 to vector<8x256xf32>
      %c0_30 = arith.constant 0 : index
      %c0_31 = arith.constant 0 : index
      %40 = vector.load %arg10[%c0_30, %c0_31] : memref<8x256xf32, #tpu.memory_space<vmem>>, vector<8x256xf32>
      tpu.vector_store %arg10[%c0_30, %c0_31], %39 {strides = array<i32>} : memref<8x256xf32, #tpu.memory_space<vmem>>, vector<8x256xf32>,
    } else {
    }
    %c0 = arith.constant 0 : index
    %c0_1 = arith.constant 0 : index
    %3 = vector.load %arg4[%c0, %c0_1] : memref<8x256xf32, #tpu.memory_space<vmem>>, vector<8x256xf32>
    %c0_2 = arith.constant 0 : index
    %c0_3 = arith.constant 0 : index
    %4 = vector.load %arg5[%c0_2, %c0_3] : memref<8x256xf32, #tpu.memory_space<vmem>>, vector<8x256xf32>
    %c0_4 = arith.constant 0 : index
    %c0_5 = arith.constant 0 : index
    %5 = vector.load %arg6[%c0_4, %c0_5] : memref<8x256xf32, #tpu.memory_space<vmem>>, vector<8x256xf32>
    %6 = arith.subf %3, %5 : vector<8x256xf32>
    %7 = arith.subf %3, %4 : vector<8x256xf32>
    %8 = arith.mulf %6, %6 : vector<8x256xf32>
    %9 = math.absf %7 : vector<8x256xf32>
    %c0_6 = arith.constant 0 : index
    %c0_7 = arith.constant 0 : index
    %10 = vector.load %arg2[%c0_6, %c0_7] : memref<1x256xf32, #tpu.memory_space<vmem>>, vector<1x256xf32>
    %c0_8 = arith.constant 0 : index
    %c0_9 = arith.constant 0 : index
    %11 = vector.load %arg3[%c0_8, %c0_9] : memref<1x256xf32, #tpu.memory_space<vmem>>, vector<1x256xf32>
    %c255_i32 = arith.constant 255 : i32
    %12 = tpu.dynamic_rotate %7 by %c255_i32 dim 1 : vector<8x256xf32>, i32 -> vector<8x256xf32>
    %c240_i32 = arith.constant 240 : i32
    %13 = tpu.dynamic_rotate %7 by %c240_i32 dim 1 : vector<8x256xf32>, i32 -> vector<8x256xf32>
    %14 = arith.subf %12, %7 : vector<8x256xf32>
    %15 = vector.broadcast %10 : vector<1x256xf32> to vector<8x256xf32>
    %16 = arith.mulf %14, %15 : vector<8x256xf32>
    %17 = arith.subf %13, %7 : vector<8x256xf32>
    %18 = vector.broadcast %11 : vector<1x256xf32> to vector<8x256xf32>
    %19 = arith.mulf %17, %18 : vector<8x256xf32>
    %20 = arith.mulf %19, %19 : vector<8x256xf32>
    %21 = arith.mulf %16, %16 : vector<8x256xf32>
    %22 = arith.addf %20, %21 : vector<8x256xf32>
    %c0_10 = arith.constant 0 : index
    %c0_11 = arith.constant 0 : index
    %23 = vector.load %arg8[%c0_10, %c0_11] : memref<8x256xf32, #tpu.memory_space<vmem>>, vector<8x256xf32>
    %24 = arith.addf %23, %8 : vector<8x256xf32>
    %c0_12 = arith.constant 0 : index
    %c0_13 = arith.constant 0 : index
    %25 = vector.load %arg8[%c0_12, %c0_13] : memref<8x256xf32, #tpu.memory_space<vmem>>, vector<8x256xf32>
    tpu.vector_store %arg8[%c0_12, %c0_13], %24 {strides = array<i32>} : memref<8x256xf32, #tpu.memory_space<vmem>>, vector<8x256xf32>,
    %c0_14 = arith.constant 0 : index
    %c0_15 = arith.constant 0 : index
    %26 = vector.load %arg9[%c0_14, %c0_15] : memref<8x256xf32, #tpu.memory_space<vmem>>, vector<8x256xf32>
    %27 = arith.addf %26, %9 : vector<8x256xf32>
    %c0_16 = arith.constant 0 : index
    %c0_17 = arith.constant 0 : index
    %28 = vector.load %arg9[%c0_16, %c0_17] : memref<8x256xf32, #tpu.memory_space<vmem>>, vector<8x256xf32>
    tpu.vector_store %arg9[%c0_16, %c0_17], %27 {strides = array<i32>} : memref<8x256xf32, #tpu.memory_space<vmem>>, vector<8x256xf32>,
    %c0_18 = arith.constant 0 : index
    %c0_19 = arith.constant 0 : index
    %29 = vector.load %arg10[%c0_18, %c0_19] : memref<8x256xf32, #tpu.memory_space<vmem>>, vector<8x256xf32>
    %30 = arith.addf %29, %22 : vector<8x256xf32>
    %c0_20 = arith.constant 0 : index
    %c0_21 = arith.constant 0 : index
    %31 = vector.load %arg10[%c0_20, %c0_21] : memref<8x256xf32, #tpu.memory_space<vmem>>, vector<8x256xf32>
    tpu.vector_store %arg10[%c0_20, %c0_21], %30 {strides = array<i32>} : memref<8x256xf32, #tpu.memory_space<vmem>>, vector<8x256xf32>,
    %c0_i32_22 = arith.constant 0 : i32
    %32 = arith.cmpi eq, %arg1, %c0_i32_22 : i32
    %33 = arith.extui %32 : i1 to i32
    %c0_i32_23 = arith.constant 0 : i32
    %34 = arith.cmpi ne, %33, %c0_i32_23 : i32
    scf.if %34 {
      %c0_24 = arith.constant 0 : index
      %c0_25 = arith.constant 0 : index
      %35 = vector.load %arg8[%c0_24, %c0_25] : memref<8x256xf32, #tpu.memory_space<vmem>>, vector<8x256xf32>
      %36 = vector.shape_cast %35 : vector<8x256xf32> to vector<1x8x256xf32>
      %cst = arith.constant dense<0.000000e+00> : vector<1xf32>
      %37 = vector.multi_reduction <add>, %36, %cst [1, 2] : vector<1x8x256xf32> to vector<1xf32>
      %38 = vector.shape_cast %37 : vector<1xf32> to vector<1x1x1xf32>
      %39 = vector.extract %38[0, 0, 0] : f32 from vector<1x1x1xf32>
      %c0_26 = arith.constant 0 : index
      %c0_27 = arith.constant 0 : index
      %40 = vector.load %arg9[%c0_26, %c0_27] : memref<8x256xf32, #tpu.memory_space<vmem>>, vector<8x256xf32>
      %41 = vector.shape_cast %40 : vector<8x256xf32> to vector<1x8x256xf32>
      %cst_28 = arith.constant dense<0.000000e+00> : vector<1xf32>
      %42 = vector.multi_reduction <add>, %41, %cst_28 [1, 2] : vector<1x8x256xf32> to vector<1xf32>
      %43 = vector.shape_cast %42 : vector<1xf32> to vector<1x1x1xf32>
      %44 = vector.extract %43[0, 0, 0] : f32 from vector<1x1x1xf32>
      %c0_29 = arith.constant 0 : index
      %c0_30 = arith.constant 0 : index
      %45 = vector.load %arg10[%c0_29, %c0_30] : memref<8x256xf32, #tpu.memory_space<vmem>>, vector<8x256xf32>
      %46 = vector.shape_cast %45 : vector<8x256xf32> to vector<1x8x256xf32>
      %cst_31 = arith.constant dense<0.000000e+00> : vector<1xf32>
      %47 = vector.multi_reduction <add>, %46, %cst_31 [1, 2] : vector<1x8x256xf32> to vector<1xf32>
      %48 = vector.shape_cast %47 : vector<1xf32> to vector<1x1x1xf32>
      %49 = vector.extract %48[0, 0, 0] : f32 from vector<1x1x1xf32>
      %50 = tpu.iota {dimensions = array<i32: 1>} : vector<1x8x128xi32>
      %c0_i32_32 = arith.constant 0 : i32
      %51 = vector.broadcast %c0_i32_32 : i32 to vector<1x8x128xi32>
      %52 = arith.cmpi eq, %50, %51 : vector<1x8x128xi32>
      %c1_i32 = arith.constant 1 : i32
      %53 = vector.broadcast %c1_i32 : i32 to vector<1x8x128xi32>
      %54 = arith.cmpi eq, %50, %53 : vector<1x8x128xi32>
      %c2_i32 = arith.constant 2 : i32
      %55 = vector.broadcast %c2_i32 : i32 to vector<1x8x128xi32>
      %56 = arith.cmpi eq, %50, %55 : vector<1x8x128xi32>
      %cst_33 = arith.constant 0.000000e+00 : f32
      %57 = vector.broadcast %49 : f32 to vector<1x8x128xf32>
      %58 = vector.broadcast %cst_33 : f32 to vector<1x8x128xf32>
      %59 = arith.select %56, %57, %58 : vector<1x8x128xi1>, vector<1x8x128xf32>
      %60 = vector.broadcast %44 : f32 to vector<1x8x128xf32>
      %61 = arith.select %54, %60, %59 : vector<1x8x128xi1>, vector<1x8x128xf32>
      %62 = vector.broadcast %39 : f32 to vector<1x8x128xf32>
      %63 = arith.select %52, %62, %61 : vector<1x8x128xi1>, vector<1x8x128xf32>
      %c0_34 = arith.constant 0 : index
      %c0_35 = arith.constant 0 : index
      %c0_36 = arith.constant 0 : index
      %64 = vector.load %arg7[%c0_34, %c0_35, %c0_36] : memref<1x8x128xf32, #tpu.memory_space<vmem>>, vector<1x8x128xf32>
      tpu.vector_store %arg7[%c0_34, %c0_35, %c0_36], %63 {strides = array<i32>} : memref<1x8x128xf32, #tpu.memory_space<vmem>>, vector<1x8x128xf32>,
    } else {
    }
    return
  }
  func.func @transform_0(%arg0: i32, %arg1: i32) -> (i32, i32) {
    %c0_i32 = arith.constant 0 : i32
    %c0_i32_0 = arith.constant 0 : i32
    %c0_i32_1 = arith.constant 0 : i32
    return %c0_i32, %c0_i32_0 : i32, i32
  }
  func.func @transform_1(%arg0: i32, %arg1: i32) -> (i32, i32) {
    %c0_i32 = arith.constant 0 : i32
    %c0_i32_0 = arith.constant 0 : i32
    %c0_i32_1 = arith.constant 0 : i32
    return %c0_i32, %c0_i32_0 : i32, i32
  }
  func.func @transform_2(%arg0: i32, %arg1: i32) -> (i32, i32) {
    %c1_i32 = arith.constant 1 : i32
    %0 = arith.muli %arg0, %c1_i32 : i32
    %1 = arith.addi %0, %arg1 : i32
    %c0_i32 = arith.constant 0 : i32
    %c0_i32_0 = arith.constant 0 : i32
    return %1, %c0_i32 : i32, i32
  }
  func.func @transform_3(%arg0: i32, %arg1: i32) -> (i32, i32) {
    %c1_i32 = arith.constant 1 : i32
    %0 = arith.muli %arg0, %c1_i32 : i32
    %1 = arith.addi %0, %arg1 : i32
    %c0_i32 = arith.constant 0 : i32
    %c0_i32_0 = arith.constant 0 : i32
    return %1, %c0_i32 : i32, i32
  }
  func.func @transform_4(%arg0: i32, %arg1: i32) -> (i32, i32) {
    %c1_i32 = arith.constant 1 : i32
    %0 = arith.muli %arg0, %c1_i32 : i32
    %1 = arith.addi %0, %arg1 : i32
    %c0_i32 = arith.constant 0 : i32
    %c0_i32_0 = arith.constant 0 : i32
    return %1, %c0_i32 : i32, i32
  }
  func.func @transform_5(%arg0: i32, %arg1: i32) -> (i32, i32, i32) {
    %c0_i32 = arith.constant 0 : i32
    %c0_i32_0 = arith.constant 0 : i32
    %c0_i32_1 = arith.constant 0 : i32
    return %arg0, %c0_i32, %c0_i32_0 : i32, i32, i32
  }
}

</mosaic_0001>

<llo_original>
// kernel: tpu_custom_call.1
$region0: #{tpu_custom_call.1}
  #allocation0 [shape = 'u32[]', space=smem, size = 0x4, offset = 0x4, fixed_abs, tag = 'smem constant byte address 0x4 - core index']
  #allocation1 [shape = 'u32[144,128]{1,0:T(1,128)}', space=vmem, size = 0x12000, scoped, tag = 'internal scratch']
  #allocation2 [shape = 'f32[8,256]{1,0:T(8,128)}', space=vmem, size = 0x2000, scoped, tag = 'scratch operand']
  #allocation3 [shape = 'f32[8,256]{1,0:T(8,128)}', space=vmem, size = 0x2000, scoped, tag = 'scratch operand']
  #allocation4 [shape = 'f32[8,256]{1,0:T(8,128)}', space=vmem, size = 0x2000, scoped, tag = 'scratch operand']
  %s0 = inlined_call_operand.hbm [shape: f32[1,256], index: 0, kind: input, shape index: {}]
  %s1 = inlined_call_operand.hbm [shape: f32[1,256], index: 1, kind: input, shape index: {}]
  %s2 = inlined_call_operand.hbm [shape: f32[8,256], index: 2, kind: input, shape index: {}]
  %s3 = inlined_call_operand.hbm [shape: f32[8,256], index: 3, kind: input, shape index: {}]
  %s4 = inlined_call_operand.hbm [shape: f32[8,256], index: 4, kind: input, shape index: {}]
  %s5 = inlined_call_operand.hbm [shape: f32[1,8,128], index: 5, kind: output, shape index: {}]
  %s6 = sld [smem:[#allocation0]]
  $region58: #{tpu_custom_call.1} parent=0
    _
  %s8 = ssub.s32 1, %s6
  %s9 = scalar_select 0, %s8, %s6
  $region1: #{tpu_custom_call.1} parent=0
    #allocation5 [shape = 'u8[1024]{0}', space=vmem, size = 0x400, scoped, tag = 'input window, operand 0, single buffered']
    #allocation6 [shape = 's32[1]{0}', space=sflag, size = 0x4, scoped, tag = 'scoped memory for tpu_custom_call.1']
    #allocation7 [shape = 's32[1]{0}', space=sflag, size = 0x4, scoped, tag = 'scoped memory for tpu_custom_call.1']
    #allocation8 [shape = 'u8[1024]{0}', space=vmem, size = 0x400, scoped, tag = 'input window, operand 1, single buffered']
    #allocation9 [shape = 's32[1]{0}', space=sflag, size = 0x4, scoped, tag = 'scoped memory for tpu_custom_call.1']
    #allocation10 [shape = 'u8[8192]{0}', space=vmem, size = 0x2000, scoped, tag = 'input window, operand 2, single buffered']
    #allocation11 [shape = 'u8[8192]{0}', space=vmem, size = 0x2000, scoped, tag = 'input window, operand 3, single buffered']
    #allocation12 [shape = 's32[1]{0}', space=sflag, size = 0x4, scoped, tag = 'scoped memory for tpu_custom_call.1']
    #allocation13 [shape = 'u8[8192]{0}', space=vmem, size = 0x2000, scoped, tag = 'input window, operand 4, single buffered']
    #allocation14 [shape = 'u8[4096]{0}', space=vmem, size = 0x1000, scoped, tag = 'output window, operand 0, single buffered']
    %10 = vsyncpa [#allocation6], 0
    %11 = vsyncpa [#allocation9], 0
    %12 = vsyncpa [#allocation12], 0
    %13 = vsyncpa [#allocation7], 0
    // Predicated region
    $region2: #{tpu_custom_call.1} parent=1 // pred_check
      _
    $region3: #{tpu_custom_call.1} parent=1 // pred_check_branch
      %15 = sbr.rel (0) target = $region5
    $region4: #{tpu_custom_call.1} parent=1 // pred_region
      %s17 = ssub.s32 32, 32
      %18 = vsyncadd [#allocation6], %s17
      %s20 = sshll.u32 [#allocation5], 4
      %s21 = int_to_ptr.vmem [resolvable:$true] %s20
      %23 = dma.hbm_to_vmem [thread:$0]  %s0, 32, %s21, [#allocation6]
    $region5: #{tpu_custom_call.1} parent=1 // pred_fallthru
      _
    // Predicated region
    $region6: #{tpu_custom_call.1} parent=1 // pred_check
      _
    $region7: #{tpu_custom_call.1} parent=1 // pred_check_branch
      %25 = sbr.rel (0) target = $region9
    $region8: #{tpu_custom_call.1} parent=1 // pred_region
      %s27 = ssub.s32 32, 32
      %28 = vsyncadd [#allocation9], %s27
      %s30 = sshll.u32 [#allocation8], 4
      %s31 = int_to_ptr.vmem [resolvable:$true] %s30
      %33 = dma.hbm_to_vmem [thread:$0]  %s1, 32, %s31, [#allocation9]
    $region9: #{tpu_custom_call.1} parent=1 // pred_fallthru
      _
    // Predicated region
    $region10: #{tpu_custom_call.1} parent=1 // pred_check
      _
    $region11: #{tpu_custom_call.1} parent=1 // pred_check_branch
      %35 = sbr.rel (0) target = $region13
    $region12: #{tpu_custom_call.1} parent=1 // pred_region
      %s36 = sadd.s32 0, 0
      %s38 = ssub.s32 256, 256
      %39 = vsyncadd [#allocation9], %s38
      %s40 = smul.addr %s36, 2
      %s41 = smul.addr %s40, 128
      %s42 = scalar_lea.hbm %s2, %s41
      %s44 = sshll.u32 [#allocation10], 4
      %s45 = int_to_ptr.vmem [resolvable:$true] %s44
      %47 = dma.hbm_to_vmem [thread:$0]  %s42, 256, %s45, [#allocation9]
    $region13: #{tpu_custom_call.1} parent=1 // pred_fallthru
      _
    // Predicated region
    $region14: #{tpu_custom_call.1} parent=1 // pred_check
      _
    $region15: #{tpu_custom_call.1} parent=1 // pred_check_branch
      %49 = sbr.rel (0) target = $region17
    $region16: #{tpu_custom_call.1} parent=1 // pred_region
      %s50 = sadd.s32 0, 0
      %s52 = ssub.s32 256, 256
      %53 = vsyncadd [#allocation12], %s52
      %s54 = smul.addr %s50, 2
      %s55 = smul.addr %s54, 128
      %s56 = scalar_lea.hbm %s3, %s55
      %s58 = sshll.u32 [#allocation11], 4
      %s59 = int_to_ptr.vmem [resolvable:$true] %s58
      %61 = dma.hbm_to_vmem [thread:$0]  %s56, 256, %s59, [#allocation12]
    $region17: #{tpu_custom_call.1} parent=1 // pred_fallthru
      _
    // Predicated region
    $region18: #{tpu_custom_call.1} parent=1 // pred_check
      _
    $region19: #{tpu_custom_call.1} parent=1 // pred_check_branch
      %63 = sbr.rel (0) target = $region21
    $region20: #{tpu_custom_call.1} parent=1 // pred_region
      %s64 = sadd.s32 0, 0
      %s66 = ssub.s32 256, 256
      %67 = vsyncadd [#allocation12], %s66
      %s68 = smul.addr %s64, 2
      %s69 = smul.addr %s68, 128
      %s70 = scalar_lea.hbm %s4, %s69
      %s72 = sshll.u32 [#allocation13], 4
      %s73 = int_to_ptr.vmem [resolvable:$true] %s72
      %75 = dma.hbm_to_vmem [thread:$0]  %s70, 256, %s73, [#allocation12]
    $region21: #{tpu_custom_call.1} parent=1 // pred_fallthru
      _
    // Predicated region
    $region22: #{tpu_custom_call.1} parent=1 // pred_check
      _
    $region23: #{tpu_custom_call.1} parent=1 // pred_check_branch
      %77 = sbr.rel (0) target = $region25
    $region24: #{tpu_custom_call.1} parent=1 // pred_region
      %78 = dma.done [#allocation6], 32
    $region25: #{tpu_custom_call.1} parent=1 // pred_fallthru
      _
    // Predicated region
    $region26: #{tpu_custom_call.1} parent=1 // pred_check
      _
    $region27: #{tpu_custom_call.1} parent=1 // pred_check_branch
      %80 = sbr.rel (0) target = $region29
    $region28: #{tpu_custom_call.1} parent=1 // pred_region
      %81 = dma.done [#allocation9], 32
    $region29: #{tpu_custom_call.1} parent=1 // pred_fallthru
      _
    // Predicated region
    $region30: #{tpu_custom_call.1} parent=1 // pred_check
      _
    $region31: #{tpu_custom_call.1} parent=1 // pred_check_branch
      %83 = sbr.rel (0) target = $region33
    $region32: #{tpu_custom_call.1} parent=1 // pred_region
      %84 = dma.done [#allocation9], 256
    $region33: #{tpu_custom_call.1} parent=1 // pred_fallthru
      _
    // Predicated region
    $region34: #{tpu_custom_call.1} parent=1 // pred_check
      _
    $region35: #{tpu_custom_call.1} parent=1 // pred_check_branch
      %86 = sbr.rel (0) target = $region37
    $region36: #{tpu_custom_call.1} parent=1 // pred_region
      %87 = dma.done [#allocation12], 256
    $region37: #{tpu_custom_call.1} parent=1 // pred_fallthru
      _
    // Predicated region
    $region38: #{tpu_custom_call.1} parent=1 // pred_check
      _
    $region39: #{tpu_custom_call.1} parent=1 // pred_check_branch
      %89 = sbr.rel (0) target = $region41
    $region40: #{tpu_custom_call.1} parent=1 // pred_region
      %90 = dma.done [#allocation12], 256
    $region41: #{tpu_custom_call.1} parent=1 // pred_fallthru
      _
    %s91 = sadd.s32 0, 0
    %s92 = sadd.s32 0, 0
    %s93 = sadd.s32 0, 0
    %p94 = scmp.eq.s32.totalorder 0, 0
    // Predicated region
    $region42: #{tpu_custom_call.1} parent=1 // pred_check
      %p95 = pneg %p94
    $region43: #{tpu_custom_call.1} parent=1 // pred_check_branch
      %97 = sbr.rel (%p95) target = $region45
    $region44: #{tpu_custom_call.1} parent=1 // pred_region
      %98 = vst [vmem:[#allocation2] sm:$0xff] 0.0
      %99 = vst [vmem:[#allocation2 + $0x8] sm:$0xff] 0.0
      %100 = vst [vmem:[#allocation3] sm:$0xff] 0.0
      %101 = vst [vmem:[#allocation3 + $0x8] sm:$0xff] 0.0
      %102 = vst [vmem:[#allocation4] sm:$0xff] 0.0
      %103 = vst [vmem:[#allocation4 + $0x8] sm:$0xff] 0.0
    $region45: #{tpu_custom_call.1} parent=1 // pred_fallthru
      _
    %v104 = vld [vmem:[#allocation10] sm:$0xff]
    %v105 = vld [vmem:[#allocation10 + $0x8] sm:$0xff]
    %v106 = vld [vmem:[#allocation11] sm:$0xff]
    %v107 = vld [vmem:[#allocation11 + $0x8] sm:$0xff]
    %v108 = vld [vmem:[#allocation13] sm:$0xff]
    %v109 = vld [vmem:[#allocation13 + $0x8] sm:$0xff]
    %v110 = vsub.f32 %v104, %v108
    %v111 = vsub.f32 %v105, %v109
    %v112 = vsub.f32 %v104, %v106
    %v113 = vsub.f32 %v105, %v107
    %v114 = vmul.f32 %v110, %v110
    %v115 = vmul.f32 %v111, %v111
    %v116 = vand.u32 2147483647, %v112
    %v117 = vand.u32 2147483647, %v113
    %v118 = vld [vmem:[#allocation5] sm:$0x3]
    %v119 = vld [vmem:[#allocation8] sm:$0x3]
    %120 = vrot.lane.b32.xlu0 %v112, 127
    %v121 = vpop.permute.xlu0 %120
    %122 = vrot.lane.b32.xlu0 %v113, 127
    %v123 = vpop.permute.xlu0 %122
    %v124 = vlaneseq
    %v125 = vand.u32 %v124, 127
    %vm126 = vcmp.lt.s32.totalorder %v125, 127
    %v127 = vsel %vm126, %v121, %v123
    %v128 = vsel %vm126, %v123, %v121
    %129 = vrot.lane.b32.xlu0 %v112, 112
    %v130 = vpop.permute.xlu0 %129
    %131 = vrot.lane.b32.xlu0 %v113, 112
    %v132 = vpop.permute.xlu0 %131
    %vm133 = vcmp.lt.s32.totalorder %v125, 112
    %v134 = vsel %vm133, %v130, %v132
    %v135 = vsel %vm133, %v132, %v130
    %v136 = vsub.f32 %v127, %v112
    %v137 = vsub.f32 %v128, %v113
    %v139 = vlaneseq
    %v140 = vshrl.u32 %v139, 7
    %v141 = vsub.s32 0, %v140
    %v142 = vrot.slane %v118, %v141
    %v143 = vlaneseq
    %v144 = vshrl.u32 %v143, 7
    %v145 = vsub.s32 1, %v144
    %v146 = vrot.slane %v118, %v145
    %v149 = vmul.f32 %v136, %v142
    %v150 = vmul.f32 %v137, %v146
    %v151 = vsub.f32 %v134, %v112
    %v152 = vsub.f32 %v135, %v113
    %v154 = vlaneseq
    %v155 = vshrl.u32 %v154, 7
    %v156 = vsub.s32 0, %v155
    %v157 = vrot.slane %v119, %v156
    %v158 = vlaneseq
    %v159 = vshrl.u32 %v158, 7
    %v160 = vsub.s32 1, %v159
    %v161 = vrot.slane %v119, %v160
    %v164 = vmul.f32 %v151, %v157
    %v165 = vmul.f32 %v152, %v161
    %v166 = vmul.f32 %v164, %v164
    %v167 = vmul.f32 %v165, %v165
    %v168 = vmul.f32 %v149, %v149
    %v169 = vmul.f32 %v150, %v150
    %v170 = vadd.f32 %v166, %v168
    %v171 = vadd.f32 %v167, %v169
    %v172 = vld [vmem:[#allocation2] sm:$0xff]
    %v173 = vld [vmem:[#allocation2 + $0x8] sm:$0xff]
    %v174 = vadd.f32 %v172, %v114
    %v175 = vadd.f32 %v173, %v115
    %176 = vst [vmem:[#allocation2] sm:$0xff] %v174
    %177 = vst [vmem:[#allocation2 + $0x8] sm:$0xff] %v175
    %v178 = vld [vmem:[#allocation3] sm:$0xff]
    %v179 = vld [vmem:[#allocation3 + $0x8] sm:$0xff]
    %v180 = vadd.f32 %v178, %v116
    %v181 = vadd.f32 %v179, %v117
    %182 = vst [vmem:[#allocation3] sm:$0xff] %v180
    %183 = vst [vmem:[#allocation3 + $0x8] sm:$0xff] %v181
    %v184 = vld [vmem:[#allocation4] sm:$0xff]
    %v185 = vld [vmem:[#allocation4 + $0x8] sm:$0xff]
    %v186 = vadd.f32 %v184, %v170
    %v187 = vadd.f32 %v185, %v171
    %188 = vst [vmem:[#allocation4] sm:$0xff] %v186
    %189 = vst [vmem:[#allocation4 + $0x8] sm:$0xff] %v187
    // Predicated region
    $region46: #{tpu_custom_call.1} parent=1 // pred_check
      %p190 = pneg %p94
    $region47: #{tpu_custom_call.1} parent=1 // pred_check_branch
      %192 = sbr.rel (%p190) target = $region49
    $region48: #{tpu_custom_call.1} parent=1 // pred_region
      %v193 = vld [vmem:[#allocation2] sm:$0xff]
      %v194 = vld [vmem:[#allocation2 + $0x8] sm:$0xff]
      %v195 = vadd.f32 %v193, %v194
      %196 = vadd.xlane.f32.xlu0 %v195
      %v197 = vpop.xlane.xlu0 %196
      %v198 = vrot.slane %v197, 4
      %v199 = vadd.f32 %v197, %v198
      %v200 = vrot.slane %v199, 2
      %v201 = vadd.f32 %v199, %v200
      %v202 = vrot.slane %v201, 1
      %v203 = vadd.f32 %v201, %v202
      %s204 = vtos %v203
      %v205 = vld [vmem:[#allocation3] sm:$0xff]
      %v206 = vld [vmem:[#allocation3 + $0x8] sm:$0xff]
      %v207 = vadd.f32 %v205, %v206
      %208 = vadd.xlane.f32.xlu0 %v207
      %v209 = vpop.xlane.xlu0 %208
      %v210 = vrot.slane %v209, 4
      %v211 = vadd.f32 %v209, %v210
      %v212 = vrot.slane %v211, 2
      %v213 = vadd.f32 %v211, %v212
      %v214 = vrot.slane %v213, 1
      %v215 = vadd.f32 %v213, %v214
      %s216 = vtos %v215
      %v217 = vld [vmem:[#allocation4] sm:$0xff]
      %v218 = vld [vmem:[#allocation4 + $0x8] sm:$0xff]
      %v219 = vadd.f32 %v217, %v218
      %220 = vadd.xlane.f32.xlu0 %v219
      %v221 = vpop.xlane.xlu0 %220
      %v222 = vrot.slane %v221, 4
      %v223 = vadd.f32 %v221, %v222
      %v224 = vrot.slane %v223, 2
      %v225 = vadd.f32 %v223, %v224
      %v226 = vrot.slane %v225, 1
      %v227 = vadd.f32 %v225, %v226
      %s228 = vtos %v227
      %v229 = vlaneseq
      %v230 = vshrl.u32 %v229, 7
      %vm231 = vcmp.eq.s32.totalorder %v230, 0
      %vm232 = vcmp.eq.s32.totalorder %v230, 1
      %vm233 = vcmp.eq.s32.totalorder %v230, 2
      %v234 = vstv %s228
      %v235 = vsel %vm233, %v234, 0.0
      %v236 = vstv %s216
      %v237 = vsel %vm232, %v236, %v235
      %v238 = vstv %s204
      %v239 = vsel %vm231, %v238, %v237
      %240 = vst [vmem:[#allocation14] sm:$0xff] %v239
    $region49: #{tpu_custom_call.1} parent=1 // pred_fallthru
      _
    // Predicated region
    $region50: #{tpu_custom_call.1} parent=1 // pred_check
      _
    $region51: #{tpu_custom_call.1} parent=1 // pred_check_branch
      %242 = sbr.rel (0) target = $region53
    $region52: #{tpu_custom_call.1} parent=1 // pred_region
      %s244 = ssub.s32 128, 128
      %245 = vsyncadd [#allocation7], %s244
      %s247 = sshll.u32 [#allocation14], 4
      %s248 = int_to_ptr.vmem [resolvable:$true] %s247
      %250 = dma.vmem_to_hbm [thread:$0]  %s248, 128, %s5, [#allocation7]
    $region53: #{tpu_custom_call.1} parent=1 // pred_fallthru
      _
    // Predicated region
    $region54: #{tpu_custom_call.1} parent=1 // pred_check
      _
    $region55: #{tpu_custom_call.1} parent=1 // pred_check_branch
      %252 = sbr.rel (0) target = $region57
    $region56: #{tpu_custom_call.1} parent=1 // pred_region
      %253 = dma.done [#allocation7], 128
    $region57: #{tpu_custom_call.1} parent=1 // pred_fallthru
      _
    %254 = vsyncpa [#allocation6], 1
    %255 = vsyncpa [#allocation9], 1
    %256 = vsyncpa [#allocation12], 1
    %257 = vsyncpa [#allocation7], 1

</llo_original>
